<compile_context>
chip_gen: v5e
topology: v5e:2x2
jax: 0.10.0
libtpu: 0.0.40
codegen_flags: <defaults>
</compile_context>

<pallas_src>
import jax
import jax.numpy as jnp
from jax.experimental import pallas as pl
from jax.experimental.pallas import tpu as pltpu

LANE = 128


def critic_kernel(state_ref, action_ref,
                  w1_ref, b1_ref,
                  w2x_ref, w2a_ref, b2_ref,
                  w3_ref, b3_ref,
                  out_ref):
    # layer 1: relu(state @ W1 + b1)                              (MXU + VPU)
    h1 = jnp.dot(state_ref[...], w1_ref[...],
                 preferred_element_type=jnp.float32) + b1_ref[...]
    h1 = jnp.maximum(h1, 0.0)

    # layer 2: relu(cat(h1, action) @ W2 + b2)
    #          == relu(h1 @ W2_x + action * W2_a + b2)
    # action term: [B,1] * [1,Hp] broadcast outer product on the VPU — avoids
    # a degenerate K=1 MXU matmul and co-issues next to the h1@W2x vmatmul.
    act_term = action_ref[...] * w2a_ref[...]
    h2 = (jnp.dot(h1, w2x_ref[...], preferred_element_type=jnp.float32)
          + act_term + b2_ref[...])
    h2 = jnp.maximum(h2, 0.0)

    # layer 3: h2 @ W3 + b3  (no activation); lane-dense (Op = 128) store.
    out_ref[...] = jnp.dot(h2, w3_ref[...],
                           preferred_element_type=jnp.float32) + b3_ref[...]


def _round_up(n, m):
    return ((n + m - 1) // m) * m


def init_params(key, input_size, hidden_size, output_size):
    """nn.Linear-style init (uniform +/- 1/sqrt(fan_in)), stored transposed
    [in, out] and zero-padded so hidden/output dims are multiples of 128 lanes.
    Padding is numerically exact (padded weight/bias lanes are 0)."""
    hp = _round_up(hidden_size, LANE)
    op = _round_up(output_size, LANE)

    def linear(k, fan_in, fan_out):
        kw, kb = jax.random.split(k)
        bound = 1.0 / float(fan_in) ** 0.5
        w = jax.random.uniform(kw, (fan_in, fan_out), jnp.float32, -bound, bound)
        b = jax.random.uniform(kb, (1, fan_out), jnp.float32, -bound, bound)
        return w, b

    def pad_cols(x, to):
        return jnp.pad(x, ((0, 0), (0, to - x.shape[1])))

    def pad_rows(x, to):
        return jnp.pad(x, ((0, to - x.shape[0]), (0, 0)))

    k1, k2, k3 = jax.random.split(key, 3)
    w1, b1 = linear(k1, input_size, hidden_size)
    # linear2 has fan_in = hidden_size + 1 (x concat action)
    w2_full, b2 = linear(k2, hidden_size + 1, hidden_size)
    w2x = w2_full[:hidden_size, :]     # acts on x      : [hidden, hidden]
    w2a = w2_full[hidden_size:, :]     # acts on action : [1, hidden]
    w3, b3 = linear(k3, hidden_size, output_size)

    w1 = pad_cols(w1, hp)
    b1 = pad_cols(b1, hp)
    w2x = pad_cols(pad_rows(w2x, hp), hp)
    w2a = pad_cols(w2a, hp)
    b2 = pad_cols(b2, hp)
    w3 = pad_cols(pad_rows(w3, hp), op)
    b3 = pad_cols(b3, op)
    return (w1, b1, w2x, w2a, b2, w3, b3)


def critic_forward(state, action, params, output_size, *, batch_tile=256):
    """state: [B, input_size], action: [B, 1] -> q: [B, output_size]."""
    w1, b1, w2x, w2a, b2, w3, b3 = params
    B, in_size = state.shape
    hp = w1.shape[1]
    op = w3.shape[1]

    # Batch tiling: single full-array block for small B; otherwise a batch grid
    # with "parallel" semantics (sharded across TCs on megacore / v7x).
    # batch_tile=256 keeps the double-buffered activation tiles tiny
    # (~a few hundred KiB), comfortably inside v7x's 64 MiB VMEM.
    if B <= batch_tile:
        tb, bp = B, B
    else:
        tb = batch_tile
        bp = pl.cdiv(B, tb) * tb
        if bp != B:
            state = jnp.pad(state, ((0, bp - B), (0, 0)))
            action = jnp.pad(action, ((0, bp - B), (0, 0)))
    grid = (bp // tb,)

    flops = 2 * bp * (in_size * hp + hp * hp + hp * op)
    param_bytes = sum(int(p.size) * 4 for p in params)
    bytes_accessed = param_bytes + 4 * bp * (in_size + 1 + op)

    q = pl.pallas_call(
        critic_kernel,
        out_shape=jax.ShapeDtypeStruct((bp, op), jnp.float32),
        grid_spec=pltpu.PrefetchScalarGridSpec(
            num_scalar_prefetch=0,
            grid=grid,
            in_specs=[
                # activations: streamed per batch tile
                pl.BlockSpec((tb, in_size), lambda i: (i, 0)),
                pl.BlockSpec((tb, 1), lambda i: (i, 0)),
                # parameters: constant block index -> DMA'd once, stay resident
                pl.BlockSpec((in_size, hp), lambda i: (0, 0)),
                pl.BlockSpec((1, hp), lambda i: (0, 0)),
                pl.BlockSpec((hp, hp), lambda i: (0, 0)),
                pl.BlockSpec((1, hp), lambda i: (0, 0)),
                pl.BlockSpec((1, hp), lambda i: (0, 0)),
                pl.BlockSpec((hp, op), lambda i: (0, 0)),
                pl.BlockSpec((1, op), lambda i: (0, 0)),
            ],
            out_specs=pl.BlockSpec((tb, op), lambda i: (i, 0)),
        ),
        compiler_params=pltpu.CompilerParams(
            dimension_semantics=("parallel",),
            vmem_limit_bytes=32 * 1024 * 1024,  # safe on v5e/v6e/v7x
        ),
        cost_estimate=pl.CostEstimate(
            flops=flops, transcendentals=0, bytes_accessed=bytes_accessed),
    )(state, action, w1, b1, w2x, w2a, b2, w3, b3)

    # slice away batch padding and padded output lanes
    return q[:B, :output_size]


def critic_reference(state, action, params, output_size):
    """Pure-JAX reference matching the PyTorch forward exactly
    (padded lanes are zero, so slicing recovers the original network)."""
    w1, b1, w2x, w2a, b2, w3, b3 = params
    x = jnp.maximum(state @ w1 + b1, 0.0)
    x = jnp.concatenate([x, action], axis=1)
    w2_full = jnp.concatenate([w2x, w2a], axis=0)
    x = jnp.maximum(x @ w2_full + b2, 0.0)
    return (x @ w3 + b3)[:, :output_size]


if __name__ == "__main__":
    input_size = 16
    hidden_size = 32
    output_size = 1

    key = jax.random.PRNGKey(0)
    k_params, k_state, k_action, k_state2, k_action2 = jax.random.split(key, 5)
    params = init_params(k_params, input_size, hidden_size, output_size)

    # --- small batch: single-block path -------------------------------------
    batch = 8
    state = jax.random.normal(k_state, (batch, input_size), jnp.float32)
    action = jax.random.normal(k_action, (batch, 1), jnp.float32)

    q = critic_forward(state, action, params, output_size)
    q = jax.block_until_ready(q)
    q_ref = critic_reference(state, action, params, output_size)
    assert q.shape == (batch, output_size)
    assert jnp.allclose(q, q_ref, atol=1e-5, rtol=1e-5), "mismatch (small batch)"

    # --- large batch: exercises the batch grid / parallel path --------------
    batch2 = 512
    state2 = jax.random.normal(k_state2, (batch2, input_size), jnp.float32)
    action2 = jax.random.normal(k_action2, (batch2, 1), jnp.float32)

    q2 = critic_forward(state2, action2, params, output_size, batch_tile=256)
    q2 = jax.block_until_ready(q2)
    q2_ref = critic_reference(state2, action2, params, output_size)
    assert q2.shape == (batch2, output_size)
    assert jnp.allclose(q2, q2_ref, atol=1e-5, rtol=1e-5), "mismatch (batched)"

    print("KERNEL_OK")
</pallas_src>

<mosaic_0001>
module attributes {stable_mosaic.version = 11 : i64} {
  func.func @critic_kernel(%arg0: i32, %arg1: memref<8x16xf32, #tpu.memory_space<vmem>>, %arg2: memref<8x1xf32, #tpu.memory_space<vmem>>, %arg3: memref<16x128xf32, #tpu.memory_space<vmem>>, %arg4: memref<1x128xf32, #tpu.memory_space<vmem>>, %arg5: memref<128x128xf32, #tpu.memory_space<vmem>>, %arg6: memref<1x128xf32, #tpu.memory_space<vmem>>, %arg7: memref<1x128xf32, #tpu.memory_space<vmem>>, %arg8: memref<128x128xf32, #tpu.memory_space<vmem>>, %arg9: memref<1x128xf32, #tpu.memory_space<vmem>>, %arg10: memref<8x128xf32, #tpu.memory_space<vmem>>) attributes {dimension_semantics = [#tpu.dimension_semantics<parallel>], iteration_bounds = array<i64: 1>, scalar_prefetch = 0 : i64, scratch_operands = 0 : i64, tpu.core_type = #tpu.core_type<tc>, window_params = [{transform_indices = @transform_0, window_bounds = array<i64: 8, 16>}, {transform_indices = @transform_1, window_bounds = array<i64: 8, 1>}, {pipeline_mode = #tpu.pipeline_mode<synchronous>, transform_indices = @transform_2, window_bounds = array<i64: 16, 128>}, {pipeline_mode = #tpu.pipeline_mode<synchronous>, transform_indices = @transform_3, window_bounds = array<i64: 1, 128>}, {pipeline_mode = #tpu.pipeline_mode<synchronous>, transform_indices = @transform_4, window_bounds = array<i64: 128, 128>}, {pipeline_mode = #tpu.pipeline_mode<synchronous>, transform_indices = @transform_5, window_bounds = array<i64: 1, 128>}, {pipeline_mode = #tpu.pipeline_mode<synchronous>, transform_indices = @transform_6, window_bounds = array<i64: 1, 128>}, {pipeline_mode = #tpu.pipeline_mode<synchronous>, transform_indices = @transform_7, window_bounds = array<i64: 128, 128>}, {pipeline_mode = #tpu.pipeline_mode<synchronous>, transform_indices = @transform_8, window_bounds = array<i64: 1, 128>}, {transform_indices = @transform_9, window_bounds = array<i64: 8, 128>}]} {
    %c0 = arith.constant 0 : index
    %c0_0 = arith.constant 0 : index
    %0 = vector.load %arg1[%c0, %c0_0] : memref<8x16xf32, #tpu.memory_space<vmem>>, vector<8x16xf32>
    %c0_1 = arith.constant 0 : index
    %c0_2 = arith.constant 0 : index
    %1 = vector.load %arg3[%c0_1, %c0_2] : memref<16x128xf32, #tpu.memory_space<vmem>>, vector<16x128xf32>
    %cst = arith.constant dense<0.000000e+00> : vector<8x128xf32>
    %2 = tpu.matmul %0, %1, %cst {dimension_numbers = #tpu.dot_dimension_numbers<[1], [0], [0], [1], [0, 0, 1, 1], [], []>} : vector<8x16xf32>, vector<16x128xf32>, vector<8x128xf32> -> vector<8x128xf32>
    %c0_3 = arith.constant 0 : index
    %c0_4 = arith.constant 0 : index
    %3 = vector.load %arg4[%c0_3, %c0_4] : memref<1x128xf32, #tpu.memory_space<vmem>>, vector<1x128xf32>
    %4 = vector.broadcast %3 : vector<1x128xf32> to vector<8x128xf32>
    %5 = arith.addf %2, %4 : vector<8x128xf32>
    %cst_5 = arith.constant 0.000000e+00 : f32
    %6 = vector.broadcast %cst_5 : f32 to vector<8x128xf32>
    %7 = arith.maximumf %5, %6 : vector<8x128xf32>
    %c0_6 = arith.constant 0 : index
    %c0_7 = arith.constant 0 : index
    %8 = vector.load %arg2[%c0_6, %c0_7] : memref<8x1xf32, #tpu.memory_space<vmem>>, vector<8x1xf32>
    %c0_8 = arith.constant 0 : index
    %c0_9 = arith.constant 0 : index
    %9 = vector.load %arg6[%c0_8, %c0_9] : memref<1x128xf32, #tpu.memory_space<vmem>>, vector<1x128xf32>
    %10 = vector.broadcast %8 : vector<8x1xf32> to vector<8x128xf32>
    %11 = vector.broadcast %9 : vector<1x128xf32> to vector<8x128xf32>
    %12 = arith.mulf %10, %11 : vector<8x128xf32>
    %c0_10 = arith.constant 0 : index
    %c0_11 = arith.constant 0 : index
    %13 = vector.load %arg5[%c0_10, %c0_11] : memref<128x128xf32, #tpu.memory_space<vmem>>, vector<128x128xf32>
    %cst_12 = arith.constant dense<0.000000e+00> : vector<8x128xf32>
    %14 = tpu.matmul %7, %13, %cst_12 {dimension_numbers = #tpu.dot_dimension_numbers<[1], [0], [0], [1], [0, 0, 1, 1], [], []>} : vector<8x128xf32>, vector<128x128xf32>, vector<8x128xf32> -> vector<8x128xf32>
    %15 = arith.addf %14, %12 : vector<8x128xf32>
    %c0_13 = arith.constant 0 : index
    %c0_14 = arith.constant 0 : index
    %16 = vector.load %arg7[%c0_13, %c0_14] : memref<1x128xf32, #tpu.memory_space<vmem>>, vector<1x128xf32>
    %17 = vector.broadcast %16 : vector<1x128xf32> to vector<8x128xf32>
    %18 = arith.addf %15, %17 : vector<8x128xf32>
    %cst_15 = arith.constant 0.000000e+00 : f32
    %19 = vector.broadcast %cst_15 : f32 to vector<8x128xf32>
    %20 = arith.maximumf %18, %19 : vector<8x128xf32>
    %c0_16 = arith.constant 0 : index
    %c0_17 = arith.constant 0 : index
    %21 = vector.load %arg8[%c0_16, %c0_17] : memref<128x128xf32, #tpu.memory_space<vmem>>, vector<128x128xf32>
    %cst_18 = arith.constant dense<0.000000e+00> : vector<8x128xf32>
    %22 = tpu.matmul %20, %21, %cst_18 {dimension_numbers = #tpu.dot_dimension_numbers<[1], [0], [0], [1], [0, 0, 1, 1], [], []>} : vector<8x128xf32>, vector<128x128xf32>, vector<8x128xf32> -> vector<8x128xf32>
    %c0_19 = arith.constant 0 : index
    %c0_20 = arith.constant 0 : index
    %23 = vector.load %arg9[%c0_19, %c0_20] : memref<1x128xf32, #tpu.memory_space<vmem>>, vector<1x128xf32>
    %24 = vector.broadcast %23 : vector<1x128xf32> to vector<8x128xf32>
    %25 = arith.addf %22, %24 : vector<8x128xf32>
    %c0_21 = arith.constant 0 : index
    %c0_22 = arith.constant 0 : index
    %26 = vector.load %arg10[%c0_21, %c0_22] : memref<8x128xf32, #tpu.memory_space<vmem>>, vector<8x128xf32>
    tpu.vector_store %arg10[%c0_21, %c0_22], %25 {strides = array<i32>} : memref<8x128xf32, #tpu.memory_space<vmem>>, vector<8x128xf32>,
    return
  }
  func.func @transform_0(%arg0: i32) -> (i32, i32) {
    %c0_i32 = arith.constant 0 : i32
    %c0_i32_0 = arith.constant 0 : i32
    return %arg0, %c0_i32 : i32, i32
  }
  func.func @transform_1(%arg0: i32) -> (i32, i32) {
    %c0_i32 = arith.constant 0 : i32
    %c0_i32_0 = arith.constant 0 : i32
    return %arg0, %c0_i32 : i32, i32
  }
  func.func @transform_2(%arg0: i32) -> (i32, i32) {
    %c0_i32 = arith.constant 0 : i32
    %c0_i32_0 = arith.constant 0 : i32
    %c0_i32_1 = arith.constant 0 : i32
    return %c0_i32, %c0_i32_0 : i32, i32
  }
  func.func @transform_3(%arg0: i32) -> (i32, i32) {
    %c0_i32 = arith.constant 0 : i32
    %c0_i32_0 = arith.constant 0 : i32
    %c0_i32_1 = arith.constant 0 : i32
    return %c0_i32, %c0_i32_0 : i32, i32
  }
  func.func @transform_4(%arg0: i32) -> (i32, i32) {
    %c0_i32 = arith.constant 0 : i32
    %c0_i32_0 = arith.constant 0 : i32
    %c0_i32_1 = arith.constant 0 : i32
    return %c0_i32, %c0_i32_0 : i32, i32
  }
  func.func @transform_5(%arg0: i32) -> (i32, i32) {
    %c0_i32 = arith.constant 0 : i32
    %c0_i32_0 = arith.constant 0 : i32
    %c0_i32_1 = arith.constant 0 : i32
    return %c0_i32, %c0_i32_0 : i32, i32
  }
  func.func @transform_6(%arg0: i32) -> (i32, i32) {
    %c0_i32 = arith.constant 0 : i32
    %c0_i32_0 = arith.constant 0 : i32
    %c0_i32_1 = arith.constant 0 : i32
    return %c0_i32, %c0_i32_0 : i32, i32
  }
  func.func @transform_7(%arg0: i32) -> (i32, i32) {
    %c0_i32 = arith.constant 0 : i32
    %c0_i32_0 = arith.constant 0 : i32
    %c0_i32_1 = arith.constant 0 : i32
    return %c0_i32, %c0_i32_0 : i32, i32
  }
  func.func @transform_8(%arg0: i32) -> (i32, i32) {
    %c0_i32 = arith.constant 0 : i32
    %c0_i32_0 = arith.constant 0 : i32
    %c0_i32_1 = arith.constant 0 : i32
    return %c0_i32, %c0_i32_0 : i32, i32
  }
  func.func @transform_9(%arg0: i32) -> (i32, i32) {
    %c0_i32 = arith.constant 0 : i32
    %c0_i32_0 = arith.constant 0 : i32
    return %arg0, %c0_i32 : i32, i32
  }
}

</mosaic_0001>

<llo_original>
// kernel: tpu_custom_call.1
$region0: #{tpu_custom_call.1}
  #allocation0 [shape = 'u32[]', space=smem, size = 0x4, offset = 0x4, fixed_abs, tag = 'smem constant byte address 0x4 - core index']
  #allocation1 [shape = 'u32[72,128]{1,0:T(1,128)}', space=vmem, size = 0x9000, scoped, tag = 'internal scratch']
  %s0 = inlined_call_operand.vmem [shape: f32[8,16], index: 0, kind: input, shape index: {}]
  %s1 = inlined_call_operand.vmem [shape: f32[8,1], index: 1, kind: input, shape index: {}]
  %s2 = inlined_call_operand.hbm [shape: f32[16,128], index: 2, kind: input, shape index: {}]
  %s3 = inlined_call_operand.vmem [shape: f32[1,128], index: 3, kind: input, shape index: {}]
  %s4 = inlined_call_operand.hbm [shape: f32[128,128], index: 4, kind: input, shape index: {}]
  %s5 = inlined_call_operand.vmem [shape: f32[1,128], index: 5, kind: input, shape index: {}]
  %s6 = inlined_call_operand.vmem [shape: f32[1,128], index: 6, kind: input, shape index: {}]
  %s7 = inlined_call_operand.hbm [shape: f32[128,128], index: 7, kind: input, shape index: {}]
  %s8 = inlined_call_operand.vmem [shape: f32[1,128], index: 8, kind: input, shape index: {}]
  %s9 = inlined_call_operand.hbm [shape: f32[8,128], index: 9, kind: output, shape index: {}]
  %s10 = sld [smem:[#allocation0]]
  $region58: #{tpu_custom_call.1} parent=0
    _
  %s12 = ssub.s32 1, %s10
  %s13 = scalar_select 0, %s12, %s10
  $region1: #{tpu_custom_call.1} parent=0
    #allocation2 [shape = 'u8[8192]{0}', space=vmem, size = 0x2000, scoped, tag = 'input window, operand 2, single buffered']
    #allocation3 [shape = 's32[1]{0}', space=sflag, size = 0x4, scoped, tag = 'scoped memory for tpu_custom_call.1']
    #allocation4 [shape = 's32[1]{0}', space=sflag, size = 0x4, scoped, tag = 'scoped memory for tpu_custom_call.1']
    #allocation5 [shape = 'u8[65536]{0}', space=vmem, size = 0x10000, scoped, tag = 'input window, operand 4, single buffered']
    #allocation6 [shape = 's32[1]{0}', space=sflag, size = 0x4, scoped, tag = 'scoped memory for tpu_custom_call.1']
    #allocation7 [shape = 'u8[65536]{0}', space=vmem, size = 0x10000, scoped, tag = 'input window, operand 7, single buffered']
    #allocation8 [shape = 'u8[4096]{0}', space=vmem, size = 0x1000, scoped, tag = 'output window, operand 0, single buffered']
    %14 = vsyncpa [#allocation3], 0
    %15 = vsyncpa [#allocation6], 0
    %16 = vsyncpa [#allocation4], 0
    // Predicated region
    $region2: #{tpu_custom_call.1} parent=1 // pred_check
      _
    $region3: #{tpu_custom_call.1} parent=1 // pred_check_branch
      %18 = sbr.rel (0) target = $region5
    $region4: #{tpu_custom_call.1} parent=1 // pred_region
      _
    $region5: #{tpu_custom_call.1} parent=1 // pred_fallthru
      _
    // Predicated region
    $region6: #{tpu_custom_call.1} parent=1 // pred_check
      _
    $region7: #{tpu_custom_call.1} parent=1 // pred_check_branch
      %20 = sbr.rel (0) target = $region9
    $region8: #{tpu_custom_call.1} parent=1 // pred_region
      _
    $region9: #{tpu_custom_call.1} parent=1 // pred_fallthru
      _
    // Predicated region
    $region10: #{tpu_custom_call.1} parent=1 // pred_check
      _
    $region11: #{tpu_custom_call.1} parent=1 // pred_check_branch
      %22 = sbr.rel (0) target = $region13
    $region12: #{tpu_custom_call.1} parent=1 // pred_region
      %24 = vsyncadd [#allocation3], 0
      %s25 = sshll.u32 %s2, 4
      %s26 = int_to_ptr.hbm [resolvable:$true] %s25
      %s27 = sshll.u32 [#allocation2], 4
      %s28 = int_to_ptr.vmem [resolvable:$true] %s27
      %33 = dma.hbm_to_vmem [thread:$0]  %s26, 256, %s28, [#allocation3], 128, 128, 8
    $region13: #{tpu_custom_call.1} parent=1 // pred_fallthru
      _
    // Predicated region
    $region14: #{tpu_custom_call.1} parent=1 // pred_check
      _
    $region15: #{tpu_custom_call.1} parent=1 // pred_check_branch
      %35 = sbr.rel (0) target = $region17
    $region16: #{tpu_custom_call.1} parent=1 // pred_region
      _
    $region17: #{tpu_custom_call.1} parent=1 // pred_fallthru
      _
    // Predicated region
    $region18: #{tpu_custom_call.1} parent=1 // pred_check
      _
    $region19: #{tpu_custom_call.1} parent=1 // pred_check_branch
      %37 = sbr.rel (0) target = $region21
    $region20: #{tpu_custom_call.1} parent=1 // pred_region
      %39 = vsyncadd [#allocation6], 0
      %s40 = sshll.u32 %s4, 4
      %s41 = int_to_ptr.hbm [resolvable:$true] %s40
      %s42 = sshll.u32 [#allocation5], 4
      %s43 = int_to_ptr.vmem [resolvable:$true] %s42
      %48 = dma.hbm_to_vmem [thread:$0]  %s41, 2048, %s43, [#allocation6], 128, 128, 8
    $region21: #{tpu_custom_call.1} parent=1 // pred_fallthru
      _
    // Predicated region
    $region22: #{tpu_custom_call.1} parent=1 // pred_check
      _
    $region23: #{tpu_custom_call.1} parent=1 // pred_check_branch
      %50 = sbr.rel (0) target = $region25
    $region24: #{tpu_custom_call.1} parent=1 // pred_region
      _
    $region25: #{tpu_custom_call.1} parent=1 // pred_fallthru
      _
    // Predicated region
    $region26: #{tpu_custom_call.1} parent=1 // pred_check
      _
    $region27: #{tpu_custom_call.1} parent=1 // pred_check_branch
      %52 = sbr.rel (0) target = $region29
    $region28: #{tpu_custom_call.1} parent=1 // pred_region
      _
    $region29: #{tpu_custom_call.1} parent=1 // pred_fallthru
      _
    // Predicated region
    $region30: #{tpu_custom_call.1} parent=1 // pred_check
      _
    $region31: #{tpu_custom_call.1} parent=1 // pred_check_branch
      %54 = sbr.rel (0) target = $region33
    $region32: #{tpu_custom_call.1} parent=1 // pred_region
      %56 = vsyncadd [#allocation6], 0
      %s57 = sshll.u32 %s7, 4
      %s58 = int_to_ptr.hbm [resolvable:$true] %s57
      %s59 = sshll.u32 [#allocation7], 4
      %s60 = int_to_ptr.vmem [resolvable:$true] %s59
      %65 = dma.hbm_to_vmem [thread:$0]  %s58, 2048, %s60, [#allocation6], 128, 128, 8
    $region33: #{tpu_custom_call.1} parent=1 // pred_fallthru
      _
    // Predicated region
    $region34: #{tpu_custom_call.1} parent=1 // pred_check
      _
    $region35: #{tpu_custom_call.1} parent=1 // pred_check_branch
      %67 = sbr.rel (0) target = $region37
    $region36: #{tpu_custom_call.1} parent=1 // pred_region
      _
    $region37: #{tpu_custom_call.1} parent=1 // pred_fallthru
      _
    // Predicated region
    $region38: #{tpu_custom_call.1} parent=1 // pred_check
      _
    $region39: #{tpu_custom_call.1} parent=1 // pred_check_branch
      %69 = sbr.rel (0) target = $region41
    $region40: #{tpu_custom_call.1} parent=1 // pred_region
      %71 = dma.done [#allocation3], 256
    $region41: #{tpu_custom_call.1} parent=1 // pred_fallthru
      _
    // Predicated region
    $region42: #{tpu_custom_call.1} parent=1 // pred_check
      _
    $region43: #{tpu_custom_call.1} parent=1 // pred_check_branch
      %73 = sbr.rel (0) target = $region45
    $region44: #{tpu_custom_call.1} parent=1 // pred_region
      %75 = dma.done [#allocation6], 2048
    $region45: #{tpu_custom_call.1} parent=1 // pred_fallthru
      _
    // Predicated region
    $region46: #{tpu_custom_call.1} parent=1 // pred_check
      _
    $region47: #{tpu_custom_call.1} parent=1 // pred_check_branch
      %77 = sbr.rel (0) target = $region49
    $region48: #{tpu_custom_call.1} parent=1 // pred_region
      %79 = dma.done [#allocation6], 2048
    $region49: #{tpu_custom_call.1} parent=1 // pred_fallthru
      _
    %v80 = vld [vmem:[%s0] sm:$0xff]
    %v81 = vld [vmem:[#allocation2] sm:$0xff]
    %v82 = vld [vmem:[#allocation2 + $0x8] sm:$0xff]
    %v83 = vld [vmem:[%s3] sm:$0x1]
    %v85 = vperm.slane %v83, 0
    %vm87 = vcmask 130048
    %v89 = vsel %vm87, %v80, 0
    %91 = vmatpush.msra.mxu0 0.0
    %92 = vmatpush.msra.mxu0 0.0
    %93 = vmatpush.msra.mxu0 0.0
    %94 = vmatpush.msra.mxu0 0.0
    %95 = vmatpush.msra.mxu0 0.0
    %96 = vmatpush.msra.mxu0 0.0
    %97 = vmatpush.msra.mxu0 0.0
    %98 = vmatpush.msra.mxu0 0.0
    %99 = vmatpush.msra.mxu0 0.0
    %100 = vmatpush.msra.mxu0 0.0
    %101 = vmatpush.msra.mxu0 0.0
    %102 = vmatpush.msra.mxu0 0.0
    %103 = vmatpush.msra.mxu0 0.0
    %104 = vmatpush.msra.mxu0 0.0
    %105 = vmatpush.msra.mxu0 %v82
    %106 = vmatpush.msra.mxu0 %v81
    %107 = vmatmul.f32.gmra.mxu0 %v89
    %v108 = vpop.f32.mrf.mxu0
    %v109 = vadd.f32 %v85, %v108
    %110 = vdwg.mxu0
    %v111 = vmax.f32 %v109, 0.0
    %v112 = vld [vmem:[%s1] sm:$0xff]
    %v113 = vld [vmem:[%s5] sm:$0x1]
    %115 = vset.pattern.permute.xlu0 0
    %116 = vperm.xlu0 %115, %v112
    %v117 = vpop.permute.xlu0 %116
    %v120 = vperm.slane %v113, 0
    %v122 = vmul.f32 %v117, %v120
    %v123 = vld [vmem:[#allocation5] sm:$0xff]
    %v124 = vld [vmem:[#allocation5 + $0x8] sm:$0xff]
    %v125 = vld [vmem:[#allocation5 + $0x10] sm:$0xff]
    %v126 = vld [vmem:[#allocation5 + $0x18] sm:$0xff]
    %v127 = vld [vmem:[#allocation5 + $0x20] sm:$0xff]
    %v128 = vld [vmem:[#allocation5 + $0x28] sm:$0xff]
    %v129 = vld [vmem:[#allocation5 + $0x30] sm:$0xff]
    %v130 = vld [vmem:[#allocation5 + $0x38] sm:$0xff]
    %v131 = vld [vmem:[#allocation5 + $0x40] sm:$0xff]
    %v132 = vld [vmem:[#allocation5 + $0x48] sm:$0xff]
    %v133 = vld [vmem:[#allocation5 + $0x50] sm:$0xff]
    %v134 = vld [vmem:[#allocation5 + $0x58] sm:$0xff]
    %v135 = vld [vmem:[#allocation5 + $0x60] sm:$0xff]
    %v136 = vld [vmem:[#allocation5 + $0x68] sm:$0xff]
    %v137 = vld [vmem:[#allocation5 + $0x70] sm:$0xff]
    %v138 = vld [vmem:[#allocation5 + $0x78] sm:$0xff]
    %139 = vmatpush.msra.mxu0 %v138
    %140 = vmatpush.msra.mxu0 %v137
    %141 = vmatpush.msra.mxu0 %v136
    %142 = vmatpush.msra.mxu0 %v135
    %143 = vmatpush.msra.mxu0 %v134
    %144 = vmatpush.msra.mxu0 %v133
    %145 = vmatpush.msra.mxu0 %v132
    %146 = vmatpush.msra.mxu0 %v131
    %147 = vmatpush.msra.mxu0 %v130
    %148 = vmatpush.msra.mxu0 %v129
    %149 = vmatpush.msra.mxu0 %v128
    %150 = vmatpush.msra.mxu0 %v127
    %151 = vmatpush.msra.mxu0 %v126
    %152 = vmatpush.msra.mxu0 %v125
    %153 = vmatpush.msra.mxu0 %v124
    %154 = vmatpush.msra.mxu0 %v123
    %155 = vmatmul.f32.gmra.mxu0 %v111
    %v156 = vpop.f32.mrf.mxu0
    %v157 = vadd.f32 %v122, %v156
    %158 = vdwg.mxu0
    %v159 = vld [vmem:[%s6] sm:$0x1]
    %v161 = vperm.slane %v159, 0
    %v163 = vadd.f32 %v157, %v161
    %v164 = vmax.f32 %v163, 0.0
    %v165 = vld [vmem:[#allocation7] sm:$0xff]
    %v166 = vld [vmem:[#allocation7 + $0x8] sm:$0xff]
    %v167 = vld [vmem:[#allocation7 + $0x10] sm:$0xff]
    %v168 = vld [vmem:[#allocation7 + $0x18] sm:$0xff]
    %v169 = vld [vmem:[#allocation7 + $0x20] sm:$0xff]
    %v170 = vld [vmem:[#allocation7 + $0x28] sm:$0xff]
    %v171 = vld [vmem:[#allocation7 + $0x30] sm:$0xff]
    %v172 = vld [vmem:[#allocation7 + $0x38] sm:$0xff]
    %v173 = vld [vmem:[#allocation7 + $0x40] sm:$0xff]
    %v174 = vld [vmem:[#allocation7 + $0x48] sm:$0xff]
    %v175 = vld [vmem:[#allocation7 + $0x50] sm:$0xff]
    %v176 = vld [vmem:[#allocation7 + $0x58] sm:$0xff]
    %v177 = vld [vmem:[#allocation7 + $0x60] sm:$0xff]
    %v178 = vld [vmem:[#allocation7 + $0x68] sm:$0xff]
    %v179 = vld [vmem:[#allocation7 + $0x70] sm:$0xff]
    %v180 = vld [vmem:[#allocation7 + $0x78] sm:$0xff]
    %v181 = vld [vmem:[%s8] sm:$0x1]
    %v183 = vperm.slane %v181, 0
    %185 = vmatpush.msra.mxu0 %v180
    %186 = vmatpush.msra.mxu0 %v179
    %187 = vmatpush.msra.mxu0 %v178
    %188 = vmatpush.msra.mxu0 %v177
    %189 = vmatpush.msra.mxu0 %v176
    %190 = vmatpush.msra.mxu0 %v175
    %191 = vmatpush.msra.mxu0 %v174
    %192 = vmatpush.msra.mxu0 %v173
    %193 = vmatpush.msra.mxu0 %v172
    %194 = vmatpush.msra.mxu0 %v171
    %195 = vmatpush.msra.mxu0 %v170
    %196 = vmatpush.msra.mxu0 %v169
    %197 = vmatpush.msra.mxu0 %v168
    %198 = vmatpush.msra.mxu0 %v167
    %199 = vmatpush.msra.mxu0 %v166
    %200 = vmatpush.msra.mxu0 %v165
    %201 = vmatmul.f32.gmra.mxu0 %v164
    %v202 = vpop.f32.mrf.mxu0
    %v203 = vadd.f32 %v183, %v202
    %204 = vdwg.mxu0
    %205 = vst [vmem:[#allocation8] sm:$0xff] %v203
    // Predicated region
    $region50: #{tpu_custom_call.1} parent=1 // pred_check
      _
    $region51: #{tpu_custom_call.1} parent=1 // pred_check_branch
      %207 = sbr.rel (0) target = $region53
    $region52: #{tpu_custom_call.1} parent=1 // pred_region
      %209 = vsyncadd [#allocation4], 0
      %s211 = sshll.u32 [#allocation8], 4
      %s212 = int_to_ptr.vmem [resolvable:$true] %s211
      %s213 = sshll.u32 %s9, 4
      %s214 = int_to_ptr.hbm [resolvable:$true] %s213
      %216 = dma.vmem_to_hbm [thread:$0]  %s212, 128, %s214, [#allocation4]
    $region53: #{tpu_custom_call.1} parent=1 // pred_fallthru
      _
    // Predicated region
    $region54: #{tpu_custom_call.1} parent=1 // pred_check
      _
    $region55: #{tpu_custom_call.1} parent=1 // pred_check_branch
      %218 = sbr.rel (0) target = $region57
    $region56: #{tpu_custom_call.1} parent=1 // pred_region
      %220 = dma.done [#allocation4], 128
    $region57: #{tpu_custom_call.1} parent=1 // pred_fallthru
      _
    %221 = vsyncpa [#allocation3], 1
    %222 = vsyncpa [#allocation6], 1
    %223 = vsyncpa [#allocation4], 1

</llo_original>
